<compile_context>
chip_gen: v5e
topology: v5e:2x2
jax: 0.10.0
libtpu: 0.0.40
codegen_flags: <defaults>
</compile_context>

<pallas_src>
import functools
import numpy as np
import jax
import jax.numpy as jnp
from jax.experimental import pallas as pl
from jax.experimental.pallas import tpu as pltpu


def _critic_kernel(x_ref, a_ref, w1_ref, b1_ref, w2s_ref, w2a_ref, b2_ref,
                   w3_ref, b3_ref, q_ref):
    A = a_ref.shape[1]            # action_size (static, tiny)
    tb = q_ref.shape[-1]          # batch-tile size

    # ---- fc1 + ReLU: MXU matmul (operands cast to MXU dtype), f32 accumulate ----
    h1 = jnp.dot(x_ref[...].astype(w1_ref.dtype), w1_ref[...],
                 preferred_element_type=jnp.float32)
    h1 = jnp.maximum(h1 + b1_ref[...], 0.0)                      # (tb, H1) f32

    # ---- fc2 on concat([h1, a]) == h1 @ W2_state + a @ W2_action ----
    h2 = jnp.dot(h1.astype(w2s_ref.dtype), w2s_ref[...],
                 preferred_element_type=jnp.float32)             # (tb, H2) f32

    a_f32 = a_ref[...].astype(jnp.float32)                       # (tb, A) f32
    w2a = w2a_ref[...]                                           # (A, H2) f32
    if A <= 8:
        # Tiny K: keep off the MXU, VPU broadcast multiply-accumulate in f32.
        for k in range(A):
            h2 = h2 + a_f32[:, k:k + 1] * w2a[k:k + 1, :]
    else:
        # Larger action spaces: single MXU dot instead of many unrolled FMAs.
        h2 = h2 + jnp.dot(a_f32, w2a, preferred_element_type=jnp.float32)

    h2 = jnp.maximum(h2 + b2_ref[...], 0.0)                      # (tb, H2) f32

    # ---- fc3 (N = 1): lane multiply + XLU reduction; lane-dense store ----
    q = jnp.sum(h2 * w3_ref[...], axis=-1, keepdims=True) + b3_ref[...]   # (tb, 1)
    q_ref[...] = q.reshape(1, 1, tb).astype(q_ref.dtype)         # cheap relayout


def _round_up(v, m):
    return ((v + m - 1) // m) * m


@functools.partial(jax.jit, static_argnames=("use_bf16", "block_b"))
def critic_forward(x, a, w1, b1, w2, b2, w3, b3, *, use_bf16=True, block_b=1024):
    """x:(B,S) f32, a:(B,A) f32 -> q:(B,1) f32."""
    B, S = x.shape
    A = a.shape[1]
    H1 = w1.shape[1]              # 400
    H2 = w2.shape[1]              # 300

    # ---- batch-tile selection ----
    # >= 2 tiles whenever B >= 16 (so the "parallel" grid axis shards across
    # v7x's two TensorCores), tile a multiple of 8 (sublanes), multiple of 128
    # when big enough (unmasked lane-dense output stores), capped at block_b.
    if B < 16:
        tb = B                                   # single tile == full array dim
    else:
        target = -(-B // 2)
        align = 128 if target >= 128 else 8
        tb = min(block_b, _round_up(target, align))
    num_tiles = pl.cdiv(B, tb)

    # ---- operand dtypes: bf16 MXU operands optional; VPU math stays f32 ----
    mxu_dtype = jnp.bfloat16 if use_bf16 else jnp.float32
    w1_c = w1.astype(mxu_dtype)                  # (S, H1)   MXU operand
    w2s_c = w2[:H1, :].astype(mxu_dtype)         # (H1, H2)  MXU operand
    w2a_c = w2[H1:, :].astype(jnp.float32)       # (A, H2)   f32 VPU operand
    b1_r = b1.reshape(1, H1).astype(jnp.float32)
    b2_r = b2.reshape(1, H2).astype(jnp.float32)
    w3_r = w3.reshape(1, H2).astype(jnp.float32)
    b3_r = b3.reshape(1, 1).astype(jnp.float32)

    w_item = 2 if use_bf16 else 4
    flops = 2 * B * (S * H1 + H1 * H2 + A * H2 + H2)
    bytes_accessed = (B * S * 4 + B * A * 4
                      + (S * H1 + H1 * H2) * w_item
                      + (A * H2 + H1 + 2 * H2 + 1) * 4
                      + num_tiles * tb * 4)

    out = pl.pallas_call(
        _critic_kernel,
        out_shape=jax.ShapeDtypeStruct((num_tiles, 1, tb), jnp.float32),
        grid_spec=pltpu.PrefetchScalarGridSpec(
            num_scalar_prefetch=0,
            grid=(num_tiles,),
            in_specs=[
                pl.BlockSpec((tb, S), lambda i: (i, 0)),        # x tile (f32, cast in-kernel)
                pl.BlockSpec((tb, A), lambda i: (i, 0)),        # a tile (f32)
                pl.BlockSpec((S, H1), lambda i: (0, 0)),        # w1 (VMEM resident)
                pl.BlockSpec((1, H1), lambda i: (0, 0)),        # b1
                pl.BlockSpec((H1, H2), lambda i: (0, 0)),       # w2 state slice (resident)
                pl.BlockSpec((A, H2), lambda i: (0, 0)),        # w2 action slice (f32)
                pl.BlockSpec((1, H2), lambda i: (0, 0)),        # b2
                pl.BlockSpec((1, H2), lambda i: (0, 0)),        # w3 as a lane row
                pl.BlockSpec((1, 1), lambda i: (0, 0)),         # b3
            ],
            out_specs=pl.BlockSpec((1, 1, tb), lambda i: (i, 0, 0)),   # lane-dense Q row
        ),
        compiler_params=pltpu.CompilerParams(
            dimension_semantics=("parallel",),   # batch tiles shard across TCs on v7x
        ),
        cost_estimate=pl.CostEstimate(
            flops=int(flops), transcendentals=0,
            bytes_accessed=int(bytes_accessed)),
    )(x, a, w1_c, b1_r, w2s_c, w2a_c, b2_r, w3_r, b3_r)

    # Drop the (garbage) rows past B from the ragged trailing tile.
    return out.reshape(num_tiles * tb)[:B].reshape(B, 1)


def init_critic_params(key, state_dim, action_size, init_w=0.003):
    """Fan-in uniform init, matching the PyTorch module's init_weights()."""
    k = jax.random.split(key, 6)
    lim1 = 1.0 / np.sqrt(state_dim)
    lim2 = 1.0 / np.sqrt(400 + action_size)
    w1 = jax.random.uniform(k[0], (state_dim, 400), jnp.float32, -lim1, lim1)
    b1 = jax.random.uniform(k[1], (400,), jnp.float32, -lim1, lim1)
    w2 = jax.random.uniform(k[2], (400 + action_size, 300), jnp.float32, -lim2, lim2)
    b2 = jax.random.uniform(k[3], (300,), jnp.float32, -lim2, lim2)
    w3 = jax.random.uniform(k[4], (300, 1), jnp.float32, -init_w, init_w)
    b3 = jax.random.uniform(k[5], (1,), jnp.float32, -init_w, init_w)
    return w1, b1, w2, b2, w3, b3


def _reference_forward(x, a, w1, b1, w2, b2, w3, b3):
    # pure-JAX reference of the PyTorch forward (for correctness checks)
    h1 = jax.nn.relu(x @ w1 + b1)
    h = jnp.concatenate([h1, a], axis=1)
    h2 = jax.nn.relu(h @ w2 + b2)
    return h2 @ w3 + b3


if __name__ == "__main__":
    key = jax.random.PRNGKey(0)
    kx, ka, kp = jax.random.split(key, 3)

    batch = 2
    state_dim = 11      # DoubleInvertedPendulum observation size
    action_size = 1

    x = jax.random.normal(kx, (batch, state_dim), jnp.float32)
    a = jax.random.normal(ka, (batch, action_size), jnp.float32)
    params = init_critic_params(kp, state_dim, action_size)

    # Small batch, f32 MXU path (single tile) -- strict check.
    q = critic_forward(x, a, *params, use_bf16=False)
    jax.block_until_ready(q)
    q_ref = _reference_forward(x, a, *params)
    np.testing.assert_allclose(np.asarray(q), np.asarray(q_ref), rtol=1e-5, atol=1e-5)
    assert q.shape == (batch, 1)

    # Larger non-tile-multiple batch: exercises the multi-tile grid with a
    # ragged trailing input block (no wrapper-side padding). f32, strict.
    B2 = 1000
    x2 = jax.random.normal(kx, (B2, state_dim), jnp.float32)
    a2 = jax.random.normal(ka, (B2, action_size), jnp.float32)
    q2_ref = _reference_forward(x2, a2, *params)
    q2 = critic_forward(x2, a2, *params, use_bf16=False)
    jax.block_until_ready(q2)
    np.testing.assert_allclose(np.asarray(q2), np.asarray(q2_ref), rtol=1e-4, atol=1e-4)

    # Default path: bf16 MXU operands, f32 accumulation -- loose tolerance.
    q2_bf16 = critic_forward(x2, a2, *params)
    jax.block_until_ready(q2_bf16)
    np.testing.assert_allclose(np.asarray(q2_bf16), np.asarray(q2_ref),
                               rtol=5e-2, atol=5e-2)

    print("KERNEL_OK")
</pallas_src>

<mosaic_0001>
module attributes {stable_mosaic.version = 11 : i64} {
  func.func @_critic_kernel(%arg0: i32, %arg1: memref<2x11xf32, #tpu.memory_space<vmem>>, %arg2: memref<2x1xf32, #tpu.memory_space<vmem>>, %arg3: memref<11x400xf32, #tpu.memory_space<vmem>>, %arg4: memref<1x400xf32, #tpu.memory_space<vmem>>, %arg5: memref<400x300xf32, #tpu.memory_space<vmem>>, %arg6: memref<1x300xf32, #tpu.memory_space<vmem>>, %arg7: memref<1x300xf32, #tpu.memory_space<vmem>>, %arg8: memref<1x300xf32, #tpu.memory_space<vmem>>, %arg9: memref<1x1xf32, #tpu.memory_space<vmem>>, %arg10: memref<1x1x2xf32, #tpu.memory_space<vmem>>) attributes {dimension_semantics = [#tpu.dimension_semantics<parallel>], iteration_bounds = array<i64: 1>, scalar_prefetch = 0 : i64, scratch_operands = 0 : i64, tpu.core_type = #tpu.core_type<tc>, window_params = [{transform_indices = @transform_0, window_bounds = array<i64: 2, 11>}, {transform_indices = @transform_1, window_bounds = array<i64: 2, 1>}, {pipeline_mode = #tpu.pipeline_mode<synchronous>, transform_indices = @transform_2, window_bounds = array<i64: 11, 400>}, {pipeline_mode = #tpu.pipeline_mode<synchronous>, transform_indices = @transform_3, window_bounds = array<i64: 1, 400>}, {pipeline_mode = #tpu.pipeline_mode<synchronous>, transform_indices = @transform_4, window_bounds = array<i64: 400, 300>}, {pipeline_mode = #tpu.pipeline_mode<synchronous>, transform_indices = @transform_5, window_bounds = array<i64: 1, 300>}, {pipeline_mode = #tpu.pipeline_mode<synchronous>, transform_indices = @transform_6, window_bounds = array<i64: 1, 300>}, {pipeline_mode = #tpu.pipeline_mode<synchronous>, transform_indices = @transform_7, window_bounds = array<i64: 1, 300>}, {pipeline_mode = #tpu.pipeline_mode<synchronous>, transform_indices = @transform_8, window_bounds = array<i64: 1, 1>}, {transform_indices = @transform_9, window_bounds = array<i64: 1, 1, 2>}]} {
    %c0 = arith.constant 0 : index
    %c0_0 = arith.constant 0 : index
    %0 = vector.load %arg1[%c0, %c0_0] : memref<2x11xf32, #tpu.memory_space<vmem>>, vector<2x11xf32>
    %c0_1 = arith.constant 0 : index
    %c0_2 = arith.constant 0 : index
    %1 = vector.load %arg3[%c0_1, %c0_2] : memref<11x400xf32, #tpu.memory_space<vmem>>, vector<11x400xf32>
    %cst = arith.constant dense<0.000000e+00> : vector<2x400xf32>
    %2 = tpu.matmul %0, %1, %cst {dimension_numbers = #tpu.dot_dimension_numbers<[1], [0], [0], [1], [0, 0, 1, 1], [], []>} : vector<2x11xf32>, vector<11x400xf32>, vector<2x400xf32> -> vector<2x400xf32>
    %c0_3 = arith.constant 0 : index
    %c0_4 = arith.constant 0 : index
    %3 = vector.load %arg4[%c0_3, %c0_4] : memref<1x400xf32, #tpu.memory_space<vmem>>, vector<1x400xf32>
    %4 = vector.broadcast %3 : vector<1x400xf32> to vector<2x400xf32>
    %5 = arith.addf %2, %4 : vector<2x400xf32>
    %cst_5 = arith.constant 0.000000e+00 : f32
    %6 = vector.broadcast %cst_5 : f32 to vector<2x400xf32>
    %7 = arith.maximumf %5, %6 : vector<2x400xf32>
    %c0_6 = arith.constant 0 : index
    %c0_7 = arith.constant 0 : index
    %8 = vector.load %arg5[%c0_6, %c0_7] : memref<400x300xf32, #tpu.memory_space<vmem>>, vector<400x300xf32>
    %cst_8 = arith.constant dense<0.000000e+00> : vector<2x300xf32>
    %9 = tpu.matmul %7, %8, %cst_8 {dimension_numbers = #tpu.dot_dimension_numbers<[1], [0], [0], [1], [0, 0, 1, 1], [], []>} : vector<2x400xf32>, vector<400x300xf32>, vector<2x300xf32> -> vector<2x300xf32>
    %c0_9 = arith.constant 0 : index
    %c0_10 = arith.constant 0 : index
    %10 = vector.load %arg2[%c0_9, %c0_10] : memref<2x1xf32, #tpu.memory_space<vmem>>, vector<2x1xf32>
    %c0_11 = arith.constant 0 : index
    %c0_12 = arith.constant 0 : index
    %11 = vector.load %arg6[%c0_11, %c0_12] : memref<1x300xf32, #tpu.memory_space<vmem>>, vector<1x300xf32>
    %12 = vector.broadcast %10 : vector<2x1xf32> to vector<2x300xf32>
    %13 = vector.broadcast %11 : vector<1x300xf32> to vector<2x300xf32>
    %14 = arith.mulf %12, %13 : vector<2x300xf32>
    %15 = arith.addf %9, %14 : vector<2x300xf32>
    %c0_13 = arith.constant 0 : index
    %c0_14 = arith.constant 0 : index
    %16 = vector.load %arg7[%c0_13, %c0_14] : memref<1x300xf32, #tpu.memory_space<vmem>>, vector<1x300xf32>
    %17 = vector.broadcast %16 : vector<1x300xf32> to vector<2x300xf32>
    %18 = arith.addf %15, %17 : vector<2x300xf32>
    %cst_15 = arith.constant 0.000000e+00 : f32
    %19 = vector.broadcast %cst_15 : f32 to vector<2x300xf32>
    %20 = arith.maximumf %18, %19 : vector<2x300xf32>
    %c0_16 = arith.constant 0 : index
    %c0_17 = arith.constant 0 : index
    %21 = vector.load %arg8[%c0_16, %c0_17] : memref<1x300xf32, #tpu.memory_space<vmem>>, vector<1x300xf32>
    %22 = vector.broadcast %21 : vector<1x300xf32> to vector<2x300xf32>
    %23 = arith.mulf %20, %22 : vector<2x300xf32>
    %cst_18 = arith.constant dense<0.000000e+00> : vector<2xf32>
    %24 = vector.multi_reduction <add>, %23, %cst_18 [1] : vector<2x300xf32> to vector<2xf32>
    %25 = vector.shape_cast %24 : vector<2xf32> to vector<2x1xf32>
    %c0_19 = arith.constant 0 : index
    %c0_20 = arith.constant 0 : index
    %26 = vector.load %arg9[%c0_19, %c0_20] : memref<1x1xf32, #tpu.memory_space<vmem>>, vector<1x1xf32>
    %27 = vector.broadcast %26 : vector<1x1xf32> to vector<2x1xf32>
    %28 = arith.addf %25, %27 : vector<2x1xf32>
    %29 = vector.shape_cast %28 : vector<2x1xf32> to vector<1x1x2xf32>
    %c0_21 = arith.constant 0 : index
    %c0_22 = arith.constant 0 : index
    %c0_23 = arith.constant 0 : index
    %30 = vector.load %arg10[%c0_21, %c0_22, %c0_23] : memref<1x1x2xf32, #tpu.memory_space<vmem>>, vector<1x1x2xf32>
    tpu.vector_store %arg10[%c0_21, %c0_22, %c0_23], %29 {strides = array<i32>} : memref<1x1x2xf32, #tpu.memory_space<vmem>>, vector<1x1x2xf32>,
    return
  }
  func.func @transform_0(%arg0: i32) -> (i32, i32) {
    %c0_i32 = arith.constant 0 : i32
    %c0_i32_0 = arith.constant 0 : i32
    return %arg0, %c0_i32 : i32, i32
  }
  func.func @transform_1(%arg0: i32) -> (i32, i32) {
    %c0_i32 = arith.constant 0 : i32
    %c0_i32_0 = arith.constant 0 : i32
    return %arg0, %c0_i32 : i32, i32
  }
  func.func @transform_2(%arg0: i32) -> (i32, i32) {
    %c0_i32 = arith.constant 0 : i32
    %c0_i32_0 = arith.constant 0 : i32
    %c0_i32_1 = arith.constant 0 : i32
    return %c0_i32, %c0_i32_0 : i32, i32
  }
  func.func @transform_3(%arg0: i32) -> (i32, i32) {
    %c0_i32 = arith.constant 0 : i32
    %c0_i32_0 = arith.constant 0 : i32
    %c0_i32_1 = arith.constant 0 : i32
    return %c0_i32, %c0_i32_0 : i32, i32
  }
  func.func @transform_4(%arg0: i32) -> (i32, i32) {
    %c0_i32 = arith.constant 0 : i32
    %c0_i32_0 = arith.constant 0 : i32
    %c0_i32_1 = arith.constant 0 : i32
    return %c0_i32, %c0_i32_0 : i32, i32
  }
  func.func @transform_5(%arg0: i32) -> (i32, i32) {
    %c0_i32 = arith.constant 0 : i32
    %c0_i32_0 = arith.constant 0 : i32
    %c0_i32_1 = arith.constant 0 : i32
    return %c0_i32, %c0_i32_0 : i32, i32
  }
  func.func @transform_6(%arg0: i32) -> (i32, i32) {
    %c0_i32 = arith.constant 0 : i32
    %c0_i32_0 = arith.constant 0 : i32
    %c0_i32_1 = arith.constant 0 : i32
    return %c0_i32, %c0_i32_0 : i32, i32
  }
  func.func @transform_7(%arg0: i32) -> (i32, i32) {
    %c0_i32 = arith.constant 0 : i32
    %c0_i32_0 = arith.constant 0 : i32
    %c0_i32_1 = arith.constant 0 : i32
    return %c0_i32, %c0_i32_0 : i32, i32
  }
  func.func @transform_8(%arg0: i32) -> (i32, i32) {
    %c0_i32 = arith.constant 0 : i32
    %c0_i32_0 = arith.constant 0 : i32
    %c0_i32_1 = arith.constant 0 : i32
    return %c0_i32, %c0_i32_0 : i32, i32
  }
  func.func @transform_9(%arg0: i32) -> (i32, i32, i32) {
    %c0_i32 = arith.constant 0 : i32
    %c0_i32_0 = arith.constant 0 : i32
    %c0_i32_1 = arith.constant 0 : i32
    return %arg0, %c0_i32, %c0_i32_0 : i32, i32, i32
  }
}

</mosaic_0001>

<llo_original>
// kernel: critic_forward.1
$region0: #{critic_forward.1}
  #allocation0 [shape = 'u32[]', space=smem, size = 0x4, offset = 0x4, fixed_abs, tag = 'smem constant byte address 0x4 - core index']
  #allocation1 [shape = 'u32[72,128]{1,0:T(1,128)}', space=vmem, size = 0x9000, scoped, tag = 'internal scratch']
  #allocation2 [shape = 'f32[1,1]{1,0:T(1,128)S(1)}', space=vmem, size = 0x200, scoped, tag = 'scoped memory for critic_forward.1']
  %s0 = inlined_call_operand.vmem [shape: f32[2,11], index: 0, kind: input, shape index: {}]
  %s1 = inlined_call_operand.vmem [shape: f32[2,1], index: 1, kind: input, shape index: {}]
  %s2 = inlined_call_operand.vmem [shape: f32[11,400], index: 2, kind: input, shape index: {}]
  %s3 = inlined_call_operand.vmem [shape: f32[1,400], index: 3, kind: input, shape index: {}]
  %s4 = inlined_call_operand.vmem [shape: f32[400,300], index: 4, kind: input, shape index: {}]
  %s5 = inlined_call_operand.vmem [shape: f32[1,300], index: 5, kind: input, shape index: {}]
  %s6 = inlined_call_operand.vmem [shape: f32[1,300], index: 6, kind: input, shape index: {}]
  %s7 = inlined_call_operand.vmem [shape: f32[1,300], index: 7, kind: input, shape index: {}]
  %s8 = inlined_call_operand.<no memory space> [shape: f32[1,1], index: 8, kind: input, shape index: {}]
  %s9 = inlined_call_operand.hbm [shape: f32[1,1,2], index: 9, kind: output, shape index: {}]
  %s10 = sld [smem:[#allocation0]]
  $region46: #{critic_forward.1} parent=0
    _
  %s12 = ssub.s32 1, %s10
  %s13 = scalar_select 0, %s12, %s10
  %v14 = vstv %s8
  %15 = vst [vmem:[#allocation2] sm:$0x1] %v14
  $region1: #{critic_forward.1} parent=0
    #allocation3 [shape = 'u8[512]{0}', space=vmem, size = 0x400, scoped, tag = 'output window, operand 0, single buffered']
    #allocation4 [shape = 's32[1]{0}', space=sflag, size = 0x4, scoped, tag = 'scoped memory for critic_forward.1']
    %16 = vsyncpa [#allocation4], 0
    // Predicated region
    $region2: #{critic_forward.1} parent=1 // pred_check
      _
    $region3: #{critic_forward.1} parent=1 // pred_check_branch
      %18 = sbr.rel (0) target = $region5
    $region4: #{critic_forward.1} parent=1 // pred_region
      _
    $region5: #{critic_forward.1} parent=1 // pred_fallthru
      _
    // Predicated region
    $region6: #{critic_forward.1} parent=1 // pred_check
      _
    $region7: #{critic_forward.1} parent=1 // pred_check_branch
      %20 = sbr.rel (0) target = $region9
    $region8: #{critic_forward.1} parent=1 // pred_region
      _
    $region9: #{critic_forward.1} parent=1 // pred_fallthru
      _
    // Predicated region
    $region10: #{critic_forward.1} parent=1 // pred_check
      _
    $region11: #{critic_forward.1} parent=1 // pred_check_branch
      %22 = sbr.rel (0) target = $region13
    $region12: #{critic_forward.1} parent=1 // pred_region
      _
    $region13: #{critic_forward.1} parent=1 // pred_fallthru
      _
    // Predicated region
    $region14: #{critic_forward.1} parent=1 // pred_check
      _
    $region15: #{critic_forward.1} parent=1 // pred_check_branch
      %24 = sbr.rel (0) target = $region17
    $region16: #{critic_forward.1} parent=1 // pred_region
      _
    $region17: #{critic_forward.1} parent=1 // pred_fallthru
      _
    // Predicated region
    $region18: #{critic_forward.1} parent=1 // pred_check
      _
    $region19: #{critic_forward.1} parent=1 // pred_check_branch
      %26 = sbr.rel (0) target = $region21
    $region20: #{critic_forward.1} parent=1 // pred_region
      _
    $region21: #{critic_forward.1} parent=1 // pred_fallthru
      _
    // Predicated region
    $region22: #{critic_forward.1} parent=1 // pred_check
      _
    $region23: #{critic_forward.1} parent=1 // pred_check_branch
      %28 = sbr.rel (0) target = $region25
    $region24: #{critic_forward.1} parent=1 // pred_region
      _
    $region25: #{critic_forward.1} parent=1 // pred_fallthru
      _
    // Predicated region
    $region26: #{critic_forward.1} parent=1 // pred_check
      _
    $region27: #{critic_forward.1} parent=1 // pred_check_branch
      %30 = sbr.rel (0) target = $region29
    $region28: #{critic_forward.1} parent=1 // pred_region
      _
    $region29: #{critic_forward.1} parent=1 // pred_fallthru
      _
    // Predicated region
    $region30: #{critic_forward.1} parent=1 // pred_check
      _
    $region31: #{critic_forward.1} parent=1 // pred_check_branch
      %32 = sbr.rel (0) target = $region33
    $region32: #{critic_forward.1} parent=1 // pred_region
      _
    $region33: #{critic_forward.1} parent=1 // pred_fallthru
      _
    // Predicated region
    $region34: #{critic_forward.1} parent=1 // pred_check
      _
    $region35: #{critic_forward.1} parent=1 // pred_check_branch
      %34 = sbr.rel (0) target = $region37
    $region36: #{critic_forward.1} parent=1 // pred_region
      _
    $region37: #{critic_forward.1} parent=1 // pred_fallthru
      _
    %v35 = vld [vmem:[%s0] sm:$0x3]
    %v36 = vld [vmem:[%s2] sm:$0xff]
    %v37 = vld [vmem:[%s2 + $0x8] sm:$0xff]
    %v38 = vld [vmem:[%s2 + $0x10] sm:$0xff]
    %v39 = vld [vmem:[%s2 + $0x18] sm:$0xff]
    %v40 = vld [vmem:[%s2 + $0x20] sm:$0x7]
    %v41 = vld [vmem:[%s2 + $0x28] sm:$0x7]
    %v42 = vld [vmem:[%s2 + $0x30] sm:$0x7]
    %v43 = vld [vmem:[%s2 + $0x38] sm:$0x7]
    %v44 = vld [vmem:[%s3] sm:$0xf]
    %v46 = vperm.slane %v44, 0
    %v47 = vperm.slane %v44, 1
    %v48 = vperm.slane %v44, 2
    %v49 = vperm.slane %v44, 3
    %vm54 = vcmask 89088
    %v56 = vsel %vm54, %v35, 0
    %vm58 = vcmask 1042432
    %v60 = vsel %vm58, %v40, 0
    %v63 = vsel %vm58, %v41, 0
    %v66 = vsel %vm58, %v42, 0
    %v69 = vsel %vm58, %v43, 0
    %71 = vmatpush.msra.mxu0 0.0
    %72 = vmatpush.msra.mxu0 0.0
    %73 = vmatpush.msra.mxu0 0.0
    %74 = vmatpush.msra.mxu0 0.0
    %75 = vmatpush.msra.mxu0 0.0
    %76 = vmatpush.msra.mxu0 0.0
    %77 = vmatpush.msra.mxu0 0.0
    %78 = vmatpush.msra.mxu0 0.0
    %79 = vmatpush.msra.mxu0 0.0
    %80 = vmatpush.msra.mxu0 0.0
    %81 = vmatpush.msra.mxu0 0.0
    %82 = vmatpush.msra.mxu0 0.0
    %83 = vmatpush.msra.mxu0 0.0
    %84 = vmatpush.msra.mxu0 0.0
    %85 = vmatpush.msra.mxu0 %v60
    %86 = vmatpush.msra.mxu0 %v36
    %87 = vmatmul.f32.gmra.mxu0 %v56
    %v88 = vpop.f32.mrf.mxu0
    %v89 = vadd.f32 %v46, %v88
    %90 = vdwg.mxu0
    %91 = vmatpush.msra.mxu0 0.0
    %92 = vmatpush.msra.mxu0 0.0
    %93 = vmatpush.msra.mxu0 0.0
    %94 = vmatpush.msra.mxu0 0.0
    %95 = vmatpush.msra.mxu0 0.0
    %96 = vmatpush.msra.mxu0 0.0
    %97 = vmatpush.msra.mxu0 0.0
    %98 = vmatpush.msra.mxu0 0.0
    %99 = vmatpush.msra.mxu0 0.0
    %100 = vmatpush.msra.mxu0 0.0
    %101 = vmatpush.msra.mxu0 0.0
    %102 = vmatpush.msra.mxu0 0.0
    %103 = vmatpush.msra.mxu0 0.0
    %104 = vmatpush.msra.mxu0 0.0
    %105 = vmatpush.msra.mxu0 %v63
    %106 = vmatpush.msra.mxu0 %v37
    %107 = vmatmul.f32.gmra.mxu0 %v56
    %v108 = vpop.f32.mrf.mxu0
    %v109 = vadd.f32 %v47, %v108
    %110 = vdwg.mxu0
    %111 = vmatpush.msra.mxu0 0.0
    %112 = vmatpush.msra.mxu0 0.0
    %113 = vmatpush.msra.mxu0 0.0
    %114 = vmatpush.msra.mxu0 0.0
    %115 = vmatpush.msra.mxu0 0.0
    %116 = vmatpush.msra.mxu0 0.0
    %117 = vmatpush.msra.mxu0 0.0
    %118 = vmatpush.msra.mxu0 0.0
    %119 = vmatpush.msra.mxu0 0.0
    %120 = vmatpush.msra.mxu0 0.0
    %121 = vmatpush.msra.mxu0 0.0
    %122 = vmatpush.msra.mxu0 0.0
    %123 = vmatpush.msra.mxu0 0.0
    %124 = vmatpush.msra.mxu0 0.0
    %125 = vmatpush.msra.mxu0 %v66
    %126 = vmatpush.msra.mxu0 %v38
    %127 = vmatmul.f32.gmra.mxu0 %v56
    %v128 = vpop.f32.mrf.mxu0
    %v129 = vadd.f32 %v48, %v128
    %130 = vdwg.mxu0
    %131 = vmatpush.msra.mxu0 0.0
    %132 = vmatpush.msra.mxu0 0.0
    %133 = vmatpush.msra.mxu0 0.0
    %134 = vmatpush.msra.mxu0 0.0
    %135 = vmatpush.msra.mxu0 0.0
    %136 = vmatpush.msra.mxu0 0.0
    %137 = vmatpush.msra.mxu0 0.0
    %138 = vmatpush.msra.mxu0 0.0
    %139 = vmatpush.msra.mxu0 0.0
    %140 = vmatpush.msra.mxu0 0.0
    %141 = vmatpush.msra.mxu0 0.0
    %142 = vmatpush.msra.mxu0 0.0
    %143 = vmatpush.msra.mxu0 0.0
    %144 = vmatpush.msra.mxu0 0.0
    %145 = vmatpush.msra.mxu0 %v69
    %146 = vmatpush.msra.mxu0 %v39
    %147 = vmatmul.f32.gmra.mxu0 %v56
    %v148 = vpop.f32.mrf.mxu0
    %v149 = vadd.f32 %v49, %v148
    %150 = vdwg.mxu0
    %v151 = vmax.f32 %v89, 0.0
    %v152 = vmax.f32 %v109, 0.0
    %v153 = vmax.f32 %v129, 0.0
    %v154 = vmax.f32 %v149, 0.0
    %v155 = vld [vmem:[%s4] sm:$0xff]
    %v156 = vld [vmem:[%s4 + $0x8] sm:$0xff]
    %v157 = vld [vmem:[%s4 + $0x10] sm:$0xff]
    %v158 = vld [vmem:[%s4 + $0x18] sm:$0xff]
    %v159 = vld [vmem:[%s4 + $0x20] sm:$0xff]
    %v160 = vld [vmem:[%s4 + $0x28] sm:$0xff]
    %v161 = vld [vmem:[%s4 + $0x30] sm:$0xff]
    %v162 = vld [vmem:[%s4 + $0x38] sm:$0xff]
    %v163 = vld [vmem:[%s4 + $0x40] sm:$0xff]
    %v164 = vld [vmem:[%s4 + $0x48] sm:$0xff]
    %v165 = vld [vmem:[%s4 + $0x50] sm:$0xff]
    %v166 = vld [vmem:[%s4 + $0x58] sm:$0xff]
    %v167 = vld [vmem:[%s4 + $0x60] sm:$0xff]
    %v168 = vld [vmem:[%s4 + $0x68] sm:$0xff]
    %v169 = vld [vmem:[%s4 + $0x70] sm:$0xff]
    %v170 = vld [vmem:[%s4 + $0x78] sm:$0xff]
    %v171 = vld [vmem:[%s4 + $0x80] sm:$0xff]
    %v172 = vld [vmem:[%s4 + $0x88] sm:$0xff]
    %v173 = vld [vmem:[%s4 + $0x90] sm:$0xff]
    %v174 = vld [vmem:[%s4 + $0x98] sm:$0xff]
    %v175 = vld [vmem:[%s4 + $0xa0] sm:$0xff]
    %v176 = vld [vmem:[%s4 + $0xa8] sm:$0xff]
    %v177 = vld [vmem:[%s4 + $0xb0] sm:$0xff]
    %v178 = vld [vmem:[%s4 + $0xb8] sm:$0xff]
    %v179 = vld [vmem:[%s4 + $0xc0] sm:$0xff]
    %v180 = vld [vmem:[%s4 + $0xc8] sm:$0xff]
    %v181 = vld [vmem:[%s4 + $0xd0] sm:$0xff]
    %v182 = vld [vmem:[%s4 + $0xd8] sm:$0xff]
    %v183 = vld [vmem:[%s4 + $0xe0] sm:$0xff]
    %v184 = vld [vmem:[%s4 + $0xe8] sm:$0xff]
    %v185 = vld [vmem:[%s4 + $0xf0] sm:$0xff]
    %v186 = vld [vmem:[%s4 + $0xf8] sm:$0xff]
    %v187 = vld [vmem:[%s4 + $0x100] sm:$0xff]
    %v188 = vld [vmem:[%s4 + $0x108] sm:$0xff]
    %v189 = vld [vmem:[%s4 + $0x110] sm:$0xff]
    %v190 = vld [vmem:[%s4 + $0x118] sm:$0xff]
    %v191 = vld [vmem:[%s4 + $0x120] sm:$0xff]
    %v192 = vld [vmem:[%s4 + $0x128] sm:$0xff]
    %v193 = vld [vmem:[%s4 + $0x130] sm:$0xff]
    %v194 = vld [vmem:[%s4 + $0x138] sm:$0xff]
    %v195 = vld [vmem:[%s4 + $0x140] sm:$0xff]
    %v196 = vld [vmem:[%s4 + $0x148] sm:$0xff]
    %v197 = vld [vmem:[%s4 + $0x150] sm:$0xff]
    %v198 = vld [vmem:[%s4 + $0x158] sm:$0xff]
    %v199 = vld [vmem:[%s4 + $0x160] sm:$0xff]
    %v200 = vld [vmem:[%s4 + $0x168] sm:$0xff]
    %v201 = vld [vmem:[%s4 + $0x170] sm:$0xff]
    %v202 = vld [vmem:[%s4 + $0x178] sm:$0xff]
    %v203 = vld [vmem:[%s4 + $0x180] sm:$0xff]
    %v204 = vld [vmem:[%s4 + $0x188] sm:$0xff]
    %v205 = vld [vmem:[%s4 + $0x190] sm:$0xff]
    %v206 = vld [vmem:[%s4 + $0x198] sm:$0xff]
    %v207 = vld [vmem:[%s4 + $0x1a0] sm:$0xff]
    %v208 = vld [vmem:[%s4 + $0x1a8] sm:$0xff]
    %v209 = vld [vmem:[%s4 + $0x1b0] sm:$0xff]
    %v210 = vld [vmem:[%s4 + $0x1b8] sm:$0xff]
    %v211 = vld [vmem:[%s4 + $0x1c0] sm:$0xff]
    %v212 = vld [vmem:[%s4 + $0x1c8] sm:$0xff]
    %v213 = vld [vmem:[%s4 + $0x1d0] sm:$0xff]
    %v214 = vld [vmem:[%s4 + $0x1d8] sm:$0xff]
    %v215 = vld [vmem:[%s4 + $0x1e0] sm:$0xff]
    %v216 = vld [vmem:[%s4 + $0x1e8] sm:$0xff]
    %v217 = vld [vmem:[%s4 + $0x1f0] sm:$0xff]
    %v218 = vld [vmem:[%s4 + $0x1f8] sm:$0xff]
    %v219 = vld [vmem:[%s4 + $0x200] sm:$0xff]
    %v220 = vld [vmem:[%s4 + $0x208] sm:$0xff]
    %v221 = vld [vmem:[%s4 + $0x210] sm:$0xff]
    %v222 = vld [vmem:[%s4 + $0x218] sm:$0xff]
    %v223 = vld [vmem:[%s4 + $0x220] sm:$0xff]
    %v224 = vld [vmem:[%s4 + $0x228] sm:$0xff]
    %v225 = vld [vmem:[%s4 + $0x230] sm:$0xff]
    %v226 = vld [vmem:[%s4 + $0x238] sm:$0xff]
    %v227 = vld [vmem:[%s4 + $0x240] sm:$0xff]
    %v228 = vld [vmem:[%s4 + $0x248] sm:$0xff]
    %v229 = vld [vmem:[%s4 + $0x250] sm:$0xff]
    %v230 = vld [vmem:[%s4 + $0x258] sm:$0xff]
    %v231 = vld [vmem:[%s4 + $0x260] sm:$0xff]
    %v232 = vld [vmem:[%s4 + $0x268] sm:$0xff]
    %v233 = vld [vmem:[%s4 + $0x270] sm:$0xff]
    %v234 = vld [vmem:[%s4 + $0x278] sm:$0xff]
    %v235 = vld [vmem:[%s4 + $0x280] sm:$0xff]
    %v236 = vld [vmem:[%s4 + $0x288] sm:$0xff]
    %v237 = vld [vmem:[%s4 + $0x290] sm:$0xff]
    %v238 = vld [vmem:[%s4 + $0x298] sm:$0xff]
    %v239 = vld [vmem:[%s4 + $0x2a0] sm:$0xff]
    %v240 = vld [vmem:[%s4 + $0x2a8] sm:$0xff]
    %v241 = vld [vmem:[%s4 + $0x2b0] sm:$0xff]
    %v242 = vld [vmem:[%s4 + $0x2b8] sm:$0xff]
    %v243 = vld [vmem:[%s4 + $0x2c0] sm:$0xff]
    %v244 = vld [vmem:[%s4 + $0x2c8] sm:$0xff]
    %v245 = vld [vmem:[%s4 + $0x2d0] sm:$0xff]
    %v246 = vld [vmem:[%s4 + $0x2d8] sm:$0xff]
    %v247 = vld [vmem:[%s4 + $0x2e0] sm:$0xff]
    %v248 = vld [vmem:[%s4 + $0x2e8] sm:$0xff]
    %v249 = vld [vmem:[%s4 + $0x2f0] sm:$0xff]
    %v250 = vld [vmem:[%s4 + $0x2f8] sm:$0xff]
    %v251 = vld [vmem:[%s4 + $0x300] sm:$0xff]
    %v252 = vld [vmem:[%s4 + $0x308] sm:$0xff]
    %v253 = vld [vmem:[%s4 + $0x310] sm:$0xff]
    %v254 = vld [vmem:[%s4 + $0x318] sm:$0xff]
    %v255 = vld [vmem:[%s4 + $0x320] sm:$0xff]
    %v256 = vld [vmem:[%s4 + $0x328] sm:$0xff]
    %v257 = vld [vmem:[%s4 + $0x330] sm:$0xff]
    %v258 = vld [vmem:[%s4 + $0x338] sm:$0xff]
    %v259 = vld [vmem:[%s4 + $0x340] sm:$0xff]
    %v260 = vld [vmem:[%s4 + $0x348] sm:$0xff]
    %v261 = vld [vmem:[%s4 + $0x350] sm:$0xff]
    %v262 = vld [vmem:[%s4 + $0x358] sm:$0xff]
    %v263 = vld [vmem:[%s4 + $0x360] sm:$0xff]
    %v264 = vld [vmem:[%s4 + $0x368] sm:$0xff]
    %v265 = vld [vmem:[%s4 + $0x370] sm:$0xff]
    %v266 = vld [vmem:[%s4 + $0x378] sm:$0xff]
    %v267 = vld [vmem:[%s4 + $0x380] sm:$0xff]
    %v268 = vld [vmem:[%s4 + $0x388] sm:$0xff]
    %v269 = vld [vmem:[%s4 + $0x390] sm:$0xff]
    %v270 = vld [vmem:[%s4 + $0x398] sm:$0xff]
    %v271 = vld [vmem:[%s4 + $0x3a0] sm:$0xff]
    %v272 = vld [vmem:[%s4 + $0x3a8] sm:$0xff]
    %v273 = vld [vmem:[%s4 + $0x3b0] sm:$0xff]
    %v274 = vld [vmem:[%s4 + $0x3b8] sm:$0xff]
    %v275 = vld [vmem:[%s4 + $0x3c0] sm:$0xff]
    %v276 = vld [vmem:[%s4 + $0x3c8] sm:$0xff]
    %v277 = vld [vmem:[%s4 + $0x3d0] sm:$0xff]
    %v278 = vld [vmem:[%s4 + $0x3d8] sm:$0xff]
    %v279 = vld [vmem:[%s4 + $0x3e0] sm:$0xff]
    %v280 = vld [vmem:[%s4 + $0x3e8] sm:$0xff]
    %v281 = vld [vmem:[%s4 + $0x3f0] sm:$0xff]
    %v282 = vld [vmem:[%s4 + $0x3f8] sm:$0xff]
    %v283 = vld [vmem:[%s4 + $0x400] sm:$0xff]
    %v284 = vld [vmem:[%s4 + $0x408] sm:$0xff]
    %v285 = vld [vmem:[%s4 + $0x410] sm:$0xff]
    %v286 = vld [vmem:[%s4 + $0x418] sm:$0xff]
    %v287 = vld [vmem:[%s4 + $0x420] sm:$0xff]
    %v288 = vld [vmem:[%s4 + $0x428] sm:$0xff]
    %v289 = vld [vmem:[%s4 + $0x430] sm:$0xff]
    %v290 = vld [vmem:[%s4 + $0x438] sm:$0xff]
    %v291 = vld [vmem:[%s4 + $0x440] sm:$0xff]
    %v292 = vld [vmem:[%s4 + $0x448] sm:$0xff]
    %v293 = vld [vmem:[%s4 + $0x450] sm:$0xff]
    %v294 = vld [vmem:[%s4 + $0x458] sm:$0xff]
    %v295 = vld [vmem:[%s4 + $0x460] sm:$0xff]
    %v296 = vld [vmem:[%s4 + $0x468] sm:$0xff]
    %v297 = vld [vmem:[%s4 + $0x470] sm:$0xff]
    %v298 = vld [vmem:[%s4 + $0x478] sm:$0xff]
    %v299 = vld [vmem:[%s4 + $0x480] sm:$0xff]
    %v300 = vld [vmem:[%s4 + $0x488] sm:$0xff]
    %v301 = vld [vmem:[%s4 + $0x490] sm:$0xff]
    %v302 = vld [vmem:[%s4 + $0x498] sm:$0xff]
    %v303 = vld [vmem:[%s4 + $0x4a0] sm:$0xff]
    %v304 = vld [vmem:[%s4 + $0x4a8] sm:$0xff]
    %v305 = vld [vmem:[%s1] sm:$0x3]
    %v306 = vld [vmem:[%s5] sm:$0x7]
    %308 = vset.pattern.permute.xlu0 0
    %309 = vperm.xlu0 %308, %v305
    %v310 = vpop.permute.xlu0 %309
    %v313 = vperm.slane %v306, 0
    %v314 = vperm.slane %v306, 1
    %v315 = vperm.slane %v306, 2
    %v319 = vmul.f32 %v310, %v313
    %v320 = vmul.f32 %v310, %v314
    %v321 = vmul.f32 %v310, %v315
    %vm322 = vcmask 130048
    %v324 = vsel %vm322, %v154, 0
    %326 = vmatpush.msra.mxu0 %v200
    %327 = vmatpush.msra.mxu0 %v197
    %328 = vmatpush.msra.mxu0 %v194
    %329 = vmatpush.msra.mxu0 %v191
    %330 = vmatpush.msra.mxu0 %v188
    %331 = vmatpush.msra.mxu0 %v185
    %332 = vmatpush.msra.mxu0 %v182
    %333 = vmatpush.msra.mxu0 %v179
    %334 = vmatpush.msra.mxu0 %v176
    %335 = vmatpush.msra.mxu0 %v173
    %336 = vmatpush.msra.mxu0 %v170
    %337 = vmatpush.msra.mxu0 %v167
    %338 = vmatpush.msra.mxu0 %v164
    %339 = vmatpush.msra.mxu0 %v161
    %340 = vmatpush.msra.mxu0 %v158
    %341 = vmatpush.msra.mxu0 %v155
    %342 = vmatmul.f32.gmra.mxu0 %v151
    %v343 = vpop.f32.mrf.mxu0
    %v344 = vadd.f32 %v319, %v343
    %345 = vdwg.mxu0
    %346 = vmatpush.msra.mxu0 %v248
    %347 = vmatpush.msra.mxu0 %v245
    %348 = vmatpush.msra.mxu0 %v242
    %349 = vmatpush.msra.mxu0 %v239
    %350 = vmatpush.msra.mxu0 %v236
    %351 = vmatpush.msra.mxu0 %v233
    %352 = vmatpush.msra.mxu0 %v230
    %353 = vmatpush.msra.mxu0 %v227
    %354 = vmatpush.msra.mxu0 %v224
    %355 = vmatpush.msra.mxu0 %v221
    %356 = vmatpush.msra.mxu0 %v218
    %357 = vmatpush.msra.mxu0 %v215
    %358 = vmatpush.msra.mxu0 %v212
    %359 = vmatpush.msra.mxu0 %v209
    %360 = vmatpush.msra.mxu0 %v206
    %361 = vmatpush.msra.mxu0 %v203
    %362 = vmatmul.f32.gmra.mxu0 %v152
    %v363 = vpop.f32.mrf.mxu0
    %v364 = vadd.f32 %v344, %v363
    %365 = vdwg.mxu0
    %366 = vmatpush.msra.mxu0 %v296
    %367 = vmatpush.msra.mxu0 %v293
    %368 = vmatpush.msra.mxu0 %v290
    %369 = vmatpush.msra.mxu0 %v287
    %370 = vmatpush.msra.mxu0 %v284
    %371 = vmatpush.msra.mxu0 %v281
    %372 = vmatpush.msra.mxu0 %v278
    %373 = vmatpush.msra.mxu0 %v275
    %374 = vmatpush.msra.mxu0 %v272
    %375 = vmatpush.msra.mxu0 %v269
    %376 = vmatpush.msra.mxu0 %v266
    %377 = vmatpush.msra.mxu0 %v263
    %378 = vmatpush.msra.mxu0 %v260
    %379 = vmatpush.msra.mxu0 %v257
    %380 = vmatpush.msra.mxu0 %v254
    %381 = vmatpush.msra.mxu0 %v251
    %382 = vmatmul.f32.gmra.mxu0 %v153
    %v383 = vpop.f32.mrf.mxu0
    %v384 = vadd.f32 %v364, %v383
    %385 = vdwg.mxu0
    %386 = vmatpush.msra.mxu0 0.0
    %387 = vmatpush.msra.mxu0 0.0
    %388 = vmatpush.msra.mxu0 0.0
    %389 = vmatpush.msra.mxu0 0.0
    %390 = vmatpush.msra.mxu0 0.0
    %391 = vmatpush.msra.mxu0 0.0
    %392 = vmatpush.msra.mxu0 0.0
    %393 = vmatpush.msra.mxu0 0.0
    %394 = vmatpush.msra.mxu0 0.0
    %395 = vmatpush.msra.mxu0 0.0
    %396 = vmatpush.msra.mxu0 0.0
    %397 = vmatpush.msra.mxu0 0.0
    %398 = vmatpush.msra.mxu0 0.0
    %399 = vmatpush.msra.mxu0 0.0
    %400 = vmatpush.msra.mxu0 %v302
    %401 = vmatpush.msra.mxu0 %v299
    %402 = vmatmul.f32.gmra.mxu0 %v324
    %v403 = vpop.f32.mrf.mxu0
    %v404 = vadd.f32 %v384, %v403
    %405 = vdwg.mxu0
    %406 = vmatpush.msra.mxu0 %v201
    %407 = vmatpush.msra.mxu0 %v198
    %408 = vmatpush.msra.mxu0 %v195
    %409 = vmatpush.msra.mxu0 %v192
    %410 = vmatpush.msra.mxu0 %v189
    %411 = vmatpush.msra.mxu0 %v186
    %412 = vmatpush.msra.mxu0 %v183
    %413 = vmatpush.msra.mxu0 %v180
    %414 = vmatpush.msra.mxu0 %v177
    %415 = vmatpush.msra.mxu0 %v174
    %416 = vmatpush.msra.mxu0 %v171
    %417 = vmatpush.msra.mxu0 %v168
    %418 = vmatpush.msra.mxu0 %v165
    %419 = vmatpush.msra.mxu0 %v162
    %420 = vmatpush.msra.mxu0 %v159
    %421 = vmatpush.msra.mxu0 %v156
    %422 = vmatmul.f32.gmra.mxu0 %v151
    %v423 = vpop.f32.mrf.mxu0
    %v424 = vadd.f32 %v320, %v423
    %425 = vdwg.mxu0
    %426 = vmatpush.msra.mxu0 %v249
    %427 = vmatpush.msra.mxu0 %v246
    %428 = vmatpush.msra.mxu0 %v243
    %429 = vmatpush.msra.mxu0 %v240
    %430 = vmatpush.msra.mxu0 %v237
    %431 = vmatpush.msra.mxu0 %v234
    %432 = vmatpush.msra.mxu0 %v231
    %433 = vmatpush.msra.mxu0 %v228
    %434 = vmatpush.msra.mxu0 %v225
    %435 = vmatpush.msra.mxu0 %v222
    %436 = vmatpush.msra.mxu0 %v219
    %437 = vmatpush.msra.mxu0 %v216
    %438 = vmatpush.msra.mxu0 %v213
    %439 = vmatpush.msra.mxu0 %v210
    %440 = vmatpush.msra.mxu0 %v207
    %441 = vmatpush.msra.mxu0 %v204
    %442 = vmatmul.f32.gmra.mxu0 %v152
    %v443 = vpop.f32.mrf.mxu0
    %v444 = vadd.f32 %v424, %v443
    %445 = vdwg.mxu0
    %446 = vmatpush.msra.mxu0 %v297
    %447 = vmatpush.msra.mxu0 %v294
    %448 = vmatpush.msra.mxu0 %v291
    %449 = vmatpush.msra.mxu0 %v288
    %450 = vmatpush.msra.mxu0 %v285
    %451 = vmatpush.msra.mxu0 %v282
    %452 = vmatpush.msra.mxu0 %v279
    %453 = vmatpush.msra.mxu0 %v276
    %454 = vmatpush.msra.mxu0 %v273
    %455 = vmatpush.msra.mxu0 %v270
    %456 = vmatpush.msra.mxu0 %v267
    %457 = vmatpush.msra.mxu0 %v264
    %458 = vmatpush.msra.mxu0 %v261
    %459 = vmatpush.msra.mxu0 %v258
    %460 = vmatpush.msra.mxu0 %v255
    %461 = vmatpush.msra.mxu0 %v252
    %462 = vmatmul.f32.gmra.mxu0 %v153
    %v463 = vpop.f32.mrf.mxu0
    %v464 = vadd.f32 %v444, %v463
    %465 = vdwg.mxu0
    %466 = vmatpush.msra.mxu0 0.0
    %467 = vmatpush.msra.mxu0 0.0
    %468 = vmatpush.msra.mxu0 0.0
    %469 = vmatpush.msra.mxu0 0.0
    %470 = vmatpush.msra.mxu0 0.0
    %471 = vmatpush.msra.mxu0 0.0
    %472 = vmatpush.msra.mxu0 0.0
    %473 = vmatpush.msra.mxu0 0.0
    %474 = vmatpush.msra.mxu0 0.0
    %475 = vmatpush.msra.mxu0 0.0
    %476 = vmatpush.msra.mxu0 0.0
    %477 = vmatpush.msra.mxu0 0.0
    %478 = vmatpush.msra.mxu0 0.0
    %479 = vmatpush.msra.mxu0 0.0
    %480 = vmatpush.msra.mxu0 %v303
    %481 = vmatpush.msra.mxu0 %v300
    %482 = vmatmul.f32.gmra.mxu0 %v324
    %v483 = vpop.f32.mrf.mxu0
    %v484 = vadd.f32 %v464, %v483
    %485 = vdwg.mxu0
    %486 = vmatpush.msra.mxu0 %v202
    %487 = vmatpush.msra.mxu0 %v199
    %488 = vmatpush.msra.mxu0 %v196
    %489 = vmatpush.msra.mxu0 %v193
    %490 = vmatpush.msra.mxu0 %v190
    %491 = vmatpush.msra.mxu0 %v187
    %492 = vmatpush.msra.mxu0 %v184
    %493 = vmatpush.msra.mxu0 %v181
    %494 = vmatpush.msra.mxu0 %v178
    %495 = vmatpush.msra.mxu0 %v175
    %496 = vmatpush.msra.mxu0 %v172
    %497 = vmatpush.msra.mxu0 %v169
    %498 = vmatpush.msra.mxu0 %v166
    %499 = vmatpush.msra.mxu0 %v163
    %500 = vmatpush.msra.mxu0 %v160
    %501 = vmatpush.msra.mxu0 %v157
    %502 = vmatmul.f32.gmra.mxu0 %v151
    %v503 = vpop.f32.mrf.mxu0
    %v504 = vadd.f32 %v321, %v503
    %505 = vdwg.mxu0
    %506 = vmatpush.msra.mxu0 %v250
    %507 = vmatpush.msra.mxu0 %v247
    %508 = vmatpush.msra.mxu0 %v244
    %509 = vmatpush.msra.mxu0 %v241
    %510 = vmatpush.msra.mxu0 %v238
    %511 = vmatpush.msra.mxu0 %v235
    %512 = vmatpush.msra.mxu0 %v232
    %513 = vmatpush.msra.mxu0 %v229
    %514 = vmatpush.msra.mxu0 %v226
    %515 = vmatpush.msra.mxu0 %v223
    %516 = vmatpush.msra.mxu0 %v220
    %517 = vmatpush.msra.mxu0 %v217
    %518 = vmatpush.msra.mxu0 %v214
    %519 = vmatpush.msra.mxu0 %v211
    %520 = vmatpush.msra.mxu0 %v208
    %521 = vmatpush.msra.mxu0 %v205
    %522 = vmatmul.f32.gmra.mxu0 %v152
    %v523 = vpop.f32.mrf.mxu0
    %v524 = vadd.f32 %v504, %v523
    %525 = vdwg.mxu0
    %526 = vmatpush.msra.mxu0 %v298
    %527 = vmatpush.msra.mxu0 %v295
    %528 = vmatpush.msra.mxu0 %v292
    %529 = vmatpush.msra.mxu0 %v289
    %530 = vmatpush.msra.mxu0 %v286
    %531 = vmatpush.msra.mxu0 %v283
    %532 = vmatpush.msra.mxu0 %v280
    %533 = vmatpush.msra.mxu0 %v277
    %534 = vmatpush.msra.mxu0 %v274
    %535 = vmatpush.msra.mxu0 %v271
    %536 = vmatpush.msra.mxu0 %v268
    %537 = vmatpush.msra.mxu0 %v265
    %538 = vmatpush.msra.mxu0 %v262
    %539 = vmatpush.msra.mxu0 %v259
    %540 = vmatpush.msra.mxu0 %v256
    %541 = vmatpush.msra.mxu0 %v253
    %542 = vmatmul.f32.gmra.mxu0 %v153
    %v543 = vpop.f32.mrf.mxu0
    %v544 = vadd.f32 %v524, %v543
    %545 = vdwg.mxu0
    %546 = vmatpush.msra.mxu0 0.0
    %547 = vmatpush.msra.mxu0 0.0
    %548 = vmatpush.msra.mxu0 0.0
    %549 = vmatpush.msra.mxu0 0.0
    %550 = vmatpush.msra.mxu0 0.0
    %551 = vmatpush.msra.mxu0 0.0
    %552 = vmatpush.msra.mxu0 0.0
    %553 = vmatpush.msra.mxu0 0.0
    %554 = vmatpush.msra.mxu0 0.0
    %555 = vmatpush.msra.mxu0 0.0
    %556 = vmatpush.msra.mxu0 0.0
    %557 = vmatpush.msra.mxu0 0.0
    %558 = vmatpush.msra.mxu0 0.0
    %559 = vmatpush.msra.mxu0 0.0
    %560 = vmatpush.msra.mxu0 %v304
    %561 = vmatpush.msra.mxu0 %v301
    %562 = vmatmul.f32.gmra.mxu0 %v324
    %v563 = vpop.f32.mrf.mxu0
    %v564 = vadd.f32 %v544, %v563
    %565 = vdwg.mxu0
    %v566 = vld [vmem:[%s6] sm:$0x7]
    %v568 = vperm.slane %v566, 0
    %v569 = vperm.slane %v566, 1
    %v570 = vperm.slane %v566, 2
    %v574 = vadd.f32 %v404, %v568
    %v575 = vadd.f32 %v484, %v569
    %v576 = vadd.f32 %v564, %v570
    %v577 = vmax.f32 %v574, 0.0
    %v578 = vmax.f32 %v575, 0.0
    %v579 = vmax.f32 %v576, 0.0
    %v580 = vld [vmem:[%s7] sm:$0x7]
    %v582 = vperm.slane %v580, 0
    %v583 = vperm.slane %v580, 1
    %v584 = vperm.slane %v580, 2
    %v588 = vmul.f32 %v577, %v582
    %v589 = vmul.f32 %v578, %v583
    %v590 = vmul.f32 %v579, %v584
    %vm591 = vcmask 1041408
    %v592 = vsel %vm591, %v588, 0.0
    %v593 = vsel %vm591, %v589, 0.0
    %v594 = vadd.f32 %v592, %v593
    %vm595 = vcmask 353280
    %v596 = vsel %vm595, %v590, 0.0
    %v597 = vadd.f32 %v594, %v596
    %598 = vadd.xlane.f32.xlu0 %v597
    %v599 = vpop.xlane.xlu0 %598
    %v600 = vld [vmem:[#allocation2] sm:$0x1]
    %v602 = vperm.slane %v600, 0
    %v604 = vadd.f32 %v599, %v602
    %606 = vset.pattern.permute.xlu0 0
    %607 = vperm.xlu0 %606, %v604
    %v608 = vpop.permute.xlu0 %607
    %v609 = vlaneseq
    %v610 = vand.u32 %v609, 127
    %v611 = vperm.slane %v608, %v610
    %vm613 = vcmask 8192
    %614 = vst.msk [vmem:[#allocation3] sm:$0x1] %vm613, %v611
    // Predicated region
    $region38: #{critic_forward.1} parent=1 // pred_check
      _
    $region39: #{critic_forward.1} parent=1 // pred_check_branch
      %616 = sbr.rel (0) target = $region41
    $region40: #{critic_forward.1} parent=1 // pred_region
      %618 = vsyncadd [#allocation4], 0
      %s620 = sshll.u32 [#allocation3], 4
      %s621 = int_to_ptr.vmem [resolvable:$true] %s620
      %s622 = sshll.u32 %s9, 4
      %s623 = int_to_ptr.hbm [resolvable:$true] %s622
      %625 = dma.vmem_to_hbm [thread:$0]  %s621, 16, %s623, [#allocation4]
    $region41: #{critic_forward.1} parent=1 // pred_fallthru
      _
    // Predicated region
    $region42: #{critic_forward.1} parent=1 // pred_check
      _
    $region43: #{critic_forward.1} parent=1 // pred_check_branch
      %627 = sbr.rel (0) target = $region45
    $region44: #{critic_forward.1} parent=1 // pred_region
      %629 = dma.done [#allocation4], 16
    $region45: #{critic_forward.1} parent=1 // pred_fallthru
      _
    %630 = vsyncpa [#allocation4], 1

</llo_original>
